<compile_context>
chip_gen: v7x
topology: tpu7x:2x2x1
jax: 0.10.0
libtpu: 0.0.40
codegen_flags: <defaults>
</compile_context>

<pallas_src>
import functools

import jax
import jax.numpy as jnp
from jax.experimental import pallas as pl
from jax.experimental.pallas import tpu as pltpu


# ---------------------------------------------------------------------------
# helpers
# ---------------------------------------------------------------------------
def _vmem_capacity_bytes():
    try:
        info = pltpu.get_tpu_info()
        cap = getattr(info, "vmem_capacity_bytes", None)
        if cap:
            return int(cap)
    except Exception:
        pass
    return 64 * 1024 * 1024  # conservative (v7x per-core VMEM)


def _pick_tile(s, row_bytes, buf_budget_bytes):
    """Lane tile (multiple of 128) for the tiled path: <= budget per buffer and
    at least 2 grid steps so double-buffering can overlap DMA with compute."""
    if s <= 128:
        return s, 1
    max_lanes = max(128, (buf_budget_bytes // max(row_bytes, 1)) // 128 * 128)
    half = max(128, ((s // 2) // 128) * 128)       # force >= 2 grid steps
    ts = min(max_lanes, half)
    return ts, pl.cdiv(s, ts)


def _pick_inner(s, row_bytes, target_bytes=128 * 1024):
    """Lane chunk for in-kernel loops of the fused path (bounded vreg set)."""
    if s <= 128:
        return s
    lanes = max(128, (target_bytes // max(row_bytes, 1)) // 128 * 128)
    return min(lanes, (s // 128) * 128)


def _mlp_sigmoid(avg_bc, max_bc, w1, b1, w2, b2, batch):
    """sigmoid(mlp(avg) + mlp(max)), avg/max rows batched into one dot pair."""
    pooled = jnp.concatenate([avg_bc, max_bc], axis=0)          # (2B, C)
    h = jnp.maximum(
        jnp.dot(pooled, w1, preferred_element_type=jnp.float32) + b1, 0.0)
    att = jnp.dot(h, w2, preferred_element_type=jnp.float32) + b2  # (2B, M)
    return jax.nn.sigmoid(att[:batch] + att[batch:])             # (B, M)


# ---------------------------------------------------------------------------
# FUSED single-pass kernel: x resident in VMEM, one read + one write of x.
# ---------------------------------------------------------------------------
def _fused_kernel(x_ref, w1_ref, b1_ref, w2_ref, b2_ref, *o_refs,
                  mod_channels, inner_ts, total_s):
    B, C, _ = x_ref.shape
    n_inner = total_s // inner_ts
    rem = total_s - n_inner * inner_ts
    aligned = (inner_ts % 128) == 0

    # ---- pooled sum / max over S (chunked: bounded vreg working set) ----
    def _stats(xs, carry):
        s, mx = carry
        return (s + jnp.sum(xs, axis=-1),
                jnp.maximum(mx, jnp.max(xs, axis=-1)))

    def red_body(i, carry):
        start = i * inner_ts
        if aligned:
            start = pl.multiple_of(start, 128)
        return _stats(x_ref[:, :, pl.ds(start, inner_ts)], carry)

    carry = (jnp.zeros((B, C), jnp.float32),
             jnp.full((B, C), -jnp.inf, jnp.float32))
    if n_inner > 0:
        carry = jax.lax.fori_loop(0, n_inner, red_body, carry)
    if rem > 0:
        carry = _stats(x_ref[:, :, pl.ds(n_inner * inner_ts, rem)], carry)
    sum_bc, max_bc = carry

    # ---- tiny MLP + sigmoid -> (B, M) gate ----
    scale = _mlp_sigmoid(sum_bc * (1.0 / total_s), max_bc,
                         w1_ref[...], b1_ref[...], w2_ref[...], b2_ref[...], B)

    # ---- gated multiply, streamed per modality (hoisted scale slices) ----
    s_mods = [scale[:, m:m + 1][:, :, None] for m in range(len(o_refs))]

    def apply_chunk(sl):
        for m, o_ref in enumerate(o_refs):
            lo = m * mod_channels
            o_ref[:, :, sl] = x_ref[:, lo:lo + mod_channels, sl] * s_mods[m]

    def apply_body(i, _):
        start = i * inner_ts
        if aligned:
            start = pl.multiple_of(start, 128)
        apply_chunk(pl.ds(start, inner_ts))
        return 0

    if n_inner > 0:
        jax.lax.fori_loop(0, n_inner, apply_body, 0)
    if rem > 0:
        apply_chunk(pl.ds(n_inner * inner_ts, rem))


# ---------------------------------------------------------------------------
# TILED pass 1: reduction over S-chunks + MLP + sigmoid -> (B, M) gate.
# ---------------------------------------------------------------------------
def _reduce_kernel(x_ref, w1_ref, b1_ref, w2_ref, b2_ref, scale_ref,
                   sum_acc, max_acc, *, total_s, tile_s, needs_mask):
    k = pl.program_id(0)

    @pl.when(k == 0)
    def _init():
        sum_acc[...] = jnp.zeros_like(sum_acc)
        max_acc[...] = jnp.full_like(max_acc, -jnp.inf)

    x = x_ref[...]                                    # (B, C, tile_s)
    if needs_mask:   # static flag: only compiled in when S % tile_s != 0
        lane = jax.lax.broadcasted_iota(jnp.int32, x.shape, 2) + k * tile_s
        valid = lane < total_s
        x_sum = jnp.where(valid, x, 0.0)
        x_max = jnp.where(valid, x, -jnp.inf)
    else:
        x_sum = x
        x_max = x
    sum_acc[...] += jnp.sum(x_sum, axis=-1)
    max_acc[...] = jnp.maximum(max_acc[...], jnp.max(x_max, axis=-1))

    @pl.when(k == pl.num_programs(0) - 1)
    def _finalize():
        B = sum_acc.shape[0]
        scale_ref[...] = _mlp_sigmoid(
            sum_acc[...] * (1.0 / total_s), max_acc[...],
            w1_ref[...], b1_ref[...], w2_ref[...], b2_ref[...], B)


# ---------------------------------------------------------------------------
# TILED pass 2: lane-dense streaming multiply; per-modality outputs direct.
# ---------------------------------------------------------------------------
def _apply_kernel(scale_ref, x_ref, *o_refs, mod_channels):
    scale = scale_ref[...]                            # (B, M), tiny
    for m, o_ref in enumerate(o_refs):
        lo = m * mod_channels
        s_m = scale[:, m:m + 1][:, :, None]           # (B, 1, 1)
        o_ref[...] = x_ref[:, lo:lo + mod_channels, :] * s_m


# ---------------------------------------------------------------------------
# Wrapper
# ---------------------------------------------------------------------------
def modality_gate_forward(x, w1, b1, w2, b2, *, in_modalities, force_path=None):
    """x: (B, C, D, H, W) float32.  Returns list of (B, C//M, D, H, W)."""
    B, C, D, H, W = x.shape
    S = D * H * W
    M = in_modalities
    assert C % M == 0, "in_channels must be divisible by in_modalities"
    mc = C // M
    hid = w1.shape[1]

    x_flat = x.reshape(B, C, S)
    b1r = b1.reshape(1, -1)
    b2r = b2.reshape(1, -1)

    bytes_x = B * C * S * 4
    row_bytes = B * C * 4
    vmem_cap = _vmem_capacity_bytes()
    vmem_limit = min(int(0.75 * vmem_cap), 100 * 1024 * 1024)

    # Fast path: whole x (+ outputs) resident in VMEM -> one HBM read of x.
    use_fused = (2 * bytes_x + (4 << 20)) <= int(0.55 * vmem_cap)
    if force_path == "fused":
        use_fused = True
    elif force_path == "tiled":
        use_fused = False

    vmem_full = pl.BlockSpec(memory_space=pltpu.MemorySpace.VMEM)
    mlp_flops = 4 * (2 * B) * C * hid + 4 * (2 * B) * hid * M

    if use_fused:
        inner_ts = _pick_inner(S, row_bytes)
        out_flats = pl.pallas_call(
            functools.partial(_fused_kernel, mod_channels=mc,
                              inner_ts=inner_ts, total_s=S),
            out_shape=tuple(jax.ShapeDtypeStruct((B, mc, S), jnp.float32)
                            for _ in range(M)),
            in_specs=[vmem_full] * 5,
            out_specs=tuple(vmem_full for _ in range(M)),
            compiler_params=pltpu.CompilerParams(vmem_limit_bytes=vmem_limit),
            cost_estimate=pl.CostEstimate(
                flops=3 * B * C * S + mlp_flops,
                transcendentals=B * M,
                bytes_accessed=2 * bytes_x + 4 * (C * hid + hid * M + hid + M)),
        )(x_flat, w1, b1r, w2, b2r)
    else:
        ts, n_chunks = _pick_tile(S, row_bytes, buf_budget_bytes=4 << 20)
        needs_mask = (S % ts) != 0

        # ----------------------- pass 1: reduction -------------------------
        scale_m = pl.pallas_call(
            functools.partial(_reduce_kernel, total_s=S, tile_s=ts,
                              needs_mask=needs_mask),
            out_shape=jax.ShapeDtypeStruct((B, M), jnp.float32),
            grid=(n_chunks,),
            in_specs=[pl.BlockSpec((B, C, ts), lambda k: (0, 0, k)),
                      vmem_full, vmem_full, vmem_full, vmem_full],
            out_specs=pl.BlockSpec((B, M), lambda k: (0, 0)),
            scratch_shapes=[pltpu.VMEM((B, C), jnp.float32),   # running sum
                            pltpu.VMEM((B, C), jnp.float32)],  # running max
            compiler_params=pltpu.CompilerParams(
                dimension_semantics=("arbitrary",),
                vmem_limit_bytes=vmem_limit),
            cost_estimate=pl.CostEstimate(
                flops=2 * B * C * S + mlp_flops,
                transcendentals=B * M,
                bytes_accessed=bytes_x + 4 * (C * hid + hid * M + hid + M + B * M)),
        )(x_flat, w1, b1r, w2, b2r)

        # ------------------------- pass 2: apply ---------------------------
        out_flats = pl.pallas_call(
            functools.partial(_apply_kernel, mod_channels=mc),
            out_shape=tuple(jax.ShapeDtypeStruct((B, mc, S), jnp.float32)
                            for _ in range(M)),
            grid=(n_chunks,),
            in_specs=[vmem_full,                                    # (B, M) gate
                      pl.BlockSpec((B, C, ts), lambda k: (0, 0, k))],
            out_specs=tuple(pl.BlockSpec((B, mc, ts), lambda k: (0, 0, k))
                            for _ in range(M)),
            compiler_params=pltpu.CompilerParams(
                dimension_semantics=("parallel",),
                vmem_limit_bytes=vmem_limit),
            cost_estimate=pl.CostEstimate(
                flops=B * C * S,
                transcendentals=0,
                bytes_accessed=2 * bytes_x + 4 * B * M),
        )(scale_m, x_flat)

    return [o.reshape(B, mc, D, H, W) for o in out_flats]


# ---------------------------------------------------------------------------
# Pure-JAX reference (mirrors the PyTorch forward).
# ---------------------------------------------------------------------------
def _reference(x, w1, b1, w2, b2, in_modalities):
    B, C, D, H, W = x.shape
    mc = C // in_modalities

    def mlp(p):
        h = jnp.maximum(p @ w1 + b1, 0.0)
        return h @ w2 + b2

    avg_pool = jnp.mean(x, axis=(2, 3, 4))
    max_pool = jnp.max(x, axis=(2, 3, 4))
    scale = jax.nn.sigmoid(mlp(avg_pool) + mlp(max_pool))
    outs = []
    for i in range(in_modalities):
        mod_x = x[:, i * mc:(i + 1) * mc]
        mod_scale = scale[:, i:i + 1][:, :, None, None, None]
        outs.append(mod_x * mod_scale)
    return outs


if __name__ == "__main__":
    # Module config (x_seg=None, seg_channels=0).
    B = 2
    in_channels = 16
    in_modalities = 2
    reduction_ratio = 4
    hidden_channels = in_channels // reduction_ratio      # 4
    D, H, W = 16, 16, 16                                  # S = 4096

    key = jax.random.PRNGKey(0)
    kx, k1, k2, k3, k4 = jax.random.split(key, 5)

    x = jax.random.normal(kx, (B, in_channels, D, H, W), dtype=jnp.float32)

    # Deterministic parameter init (Linear weights stored as (in, out)).
    w1 = 0.1 * jax.random.normal(k1, (in_channels, hidden_channels), jnp.float32)
    b1 = 0.1 * jax.random.normal(k2, (hidden_channels,), jnp.float32)
    w2 = 0.1 * jax.random.normal(k3, (hidden_channels, in_modalities), jnp.float32)
    b2 = 0.1 * jax.random.normal(k4, (in_modalities,), jnp.float32)

    refs = _reference(x, w1, b1, w2, b2, in_modalities)

    # Exercise both the fused single-pass path and the tiled two-pass path.
    for path in ("fused", "tiled"):
        outs = modality_gate_forward(x, w1, b1, w2, b2,
                                     in_modalities=in_modalities,
                                     force_path=path)
        outs = [jax.block_until_ready(o) for o in outs]
        for o, r in zip(outs, refs):
            assert o.shape == r.shape, (path, o.shape, r.shape)
            assert jnp.allclose(o, r, atol=1e-4, rtol=1e-4), \
                f"mismatch vs reference ({path})"

    print("KERNEL_OK")
</pallas_src>

<mosaic_0001>
module attributes {stable_mosaic.version = 11 : i64} {
  func.func @_fused_kernel(%arg0: memref<2x16x4096xf32, #tpu.memory_space<vmem>>, %arg1: memref<16x4xf32, #tpu.memory_space<vmem>>, %arg2: memref<1x4xf32, #tpu.memory_space<vmem>>, %arg3: memref<4x2xf32, #tpu.memory_space<vmem>>, %arg4: memref<1x2xf32, #tpu.memory_space<vmem>>, %arg5: memref<2x8x4096xf32, #tpu.memory_space<vmem>>, %arg6: memref<2x8x4096xf32, #tpu.memory_space<vmem>>) attributes {dimension_semantics = [], scalar_prefetch = 0 : i64, scratch_operands = 0 : i64, tpu.core_type = #tpu.core_type<tc>} {
    %cst = arith.constant 0.000000e+00 : f32
    %0 = vector.broadcast %cst : f32 to vector<2x16xf32>
    %cst_0 = arith.constant 0xFF800000 : f32
    %1 = vector.broadcast %cst_0 : f32 to vector<2x16xf32>
    %c0_i32 = arith.constant 0 : i32
    %c4_i32 = arith.constant 4 : i32
    %2 = arith.addi %c0_i32, %c4_i32 : i32
    %c1_i32 = arith.constant 1 : i32
    %3:2 = scf.for %arg7 = %c0_i32 to %2 step %c1_i32 iter_args(%arg8 = %0, %arg9 = %1) -> (vector<2x16xf32>, vector<2x16xf32>)  : i32 {
      %c1024_i32 = arith.constant 1024 : i32
      %32 = arith.muli %arg7, %c1024_i32 : i32
      %33 = tpu.assume_multiple %32, 128 : i32
      %c0_18 = arith.constant 0 : index
      %c0_19 = arith.constant 0 : index
      %34 = arith.index_cast %33 : i32 to index
      %35 = vector.load %arg0[%c0_18, %c0_19, %34] : memref<2x16x4096xf32, #tpu.memory_space<vmem>>, vector<2x16x1024xf32>
      %cst_20 = arith.constant dense<0.000000e+00> : vector<2x16xf32>
      %36 = vector.multi_reduction <add>, %35, %cst_20 [2] : vector<2x16x1024xf32> to vector<2x16xf32>
      %37 = arith.addf %arg8, %36 : vector<2x16xf32>
      %cst_21 = arith.constant dense<0xFF800000> : vector<2x16xf32>
      %38 = vector.multi_reduction <maximumf>, %35, %cst_21 [2] : vector<2x16x1024xf32> to vector<2x16xf32>
      %39 = arith.maximumf %arg9, %38 : vector<2x16xf32>
      scf.yield %37, %39 : vector<2x16xf32>, vector<2x16xf32>
    }
    %c4_i32_1 = arith.constant 4 : i32
    %cst_2 = arith.constant 2.44140625E-4 : f32
    %4 = vector.broadcast %cst_2 : f32 to vector<2x16xf32>
    %5 = arith.mulf %3#0, %4 : vector<2x16xf32>
    %c0 = arith.constant 0 : index
    %c0_3 = arith.constant 0 : index
    %6 = vector.load %arg1[%c0, %c0_3] : memref<16x4xf32, #tpu.memory_space<vmem>>, vector<16x4xf32>
    %c0_4 = arith.constant 0 : index
    %c0_5 = arith.constant 0 : index
    %7 = vector.load %arg2[%c0_4, %c0_5] : memref<1x4xf32, #tpu.memory_space<vmem>>, vector<1x4xf32>
    %c0_6 = arith.constant 0 : index
    %c0_7 = arith.constant 0 : index
    %8 = vector.load %arg3[%c0_6, %c0_7] : memref<4x2xf32, #tpu.memory_space<vmem>>, vector<4x2xf32>
    %c0_8 = arith.constant 0 : index
    %c0_9 = arith.constant 0 : index
    %9 = vector.load %arg4[%c0_8, %c0_9] : memref<1x2xf32, #tpu.memory_space<vmem>>, vector<1x2xf32>
    %10 = tpu.concatenate %5, %3#1 in 0 : vector<2x16xf32>, vector<2x16xf32> -> vector<4x16xf32>
    %cst_10 = arith.constant dense<0.000000e+00> : vector<4x4xf32>
    %11 = tpu.matmul %10, %6, %cst_10 {dimension_numbers = #tpu.dot_dimension_numbers<[1], [0], [0], [1], [0, 0, 1, 1], [], []>} : vector<4x16xf32>, vector<16x4xf32>, vector<4x4xf32> -> vector<4x4xf32>
    %12 = vector.broadcast %7 : vector<1x4xf32> to vector<4x4xf32>
    %13 = arith.addf %11, %12 : vector<4x4xf32>
    %cst_11 = arith.constant 0.000000e+00 : f32
    %14 = vector.broadcast %cst_11 : f32 to vector<4x4xf32>
    %15 = arith.maximumf %13, %14 : vector<4x4xf32>
    %cst_12 = arith.constant dense<0.000000e+00> : vector<4x2xf32>
    %16 = tpu.matmul %15, %8, %cst_12 {dimension_numbers = #tpu.dot_dimension_numbers<[1], [0], [0], [1], [0, 0, 1, 1], [], []>} : vector<4x4xf32>, vector<4x2xf32>, vector<4x2xf32> -> vector<4x2xf32>
    %17 = vector.broadcast %9 : vector<1x2xf32> to vector<4x2xf32>
    %18 = arith.addf %16, %17 : vector<4x2xf32>
    %19 = vector.extract_strided_slice %18 {offsets = [0, 0], sizes = [2, 2], strides = [1, 1]} : vector<4x2xf32> to vector<2x2xf32>
    %20 = vector.extract_strided_slice %18 {offsets = [2, 0], sizes = [2, 2], strides = [1, 1]} : vector<4x2xf32> to vector<2x2xf32>
    %21 = arith.addf %19, %20 : vector<2x2xf32>
    %22 = arith.negf %21 : vector<2x2xf32>
    %23 = math.exp %22 : vector<2x2xf32>
    %cst_13 = arith.constant 1.000000e+00 : f32
    %24 = vector.broadcast %cst_13 : f32 to vector<2x2xf32>
    %25 = arith.addf %24, %23 : vector<2x2xf32>
    %26 = arith.divf %24, %25 : vector<2x2xf32>
    %27 = vector.extract_strided_slice %26 {offsets = [0, 0], sizes = [2, 1], strides = [1, 1]} : vector<2x2xf32> to vector<2x1xf32>
    %28 = vector.shape_cast %27 : vector<2x1xf32> to vector<2x1x1xf32>
    %29 = vector.extract_strided_slice %26 {offsets = [0, 1], sizes = [2, 1], strides = [1, 1]} : vector<2x2xf32> to vector<2x1xf32>
    %30 = vector.shape_cast %29 : vector<2x1xf32> to vector<2x1x1xf32>
    %c0_i32_14 = arith.constant 0 : i32
    %c4_i32_15 = arith.constant 4 : i32
    %31 = arith.addi %c0_i32_14, %c4_i32_15 : i32
    %c1_i32_16 = arith.constant 1 : i32
    scf.for %arg7 = %c0_i32_14 to %31 step %c1_i32_16  : i32 {
      %c1024_i32 = arith.constant 1024 : i32
      %32 = arith.muli %arg7, %c1024_i32 : i32
      %33 = tpu.assume_multiple %32, 128 : i32
      %c0_18 = arith.constant 0 : index
      %c0_19 = arith.constant 0 : index
      %34 = arith.index_cast %33 : i32 to index
      %35 = vector.load %arg0[%c0_18, %c0_19, %34] : memref<2x16x4096xf32, #tpu.memory_space<vmem>>, vector<2x8x1024xf32>
      %36 = vector.broadcast %28 : vector<2x1x1xf32> to vector<2x8x1024xf32>
      %37 = arith.mulf %35, %36 : vector<2x8x1024xf32>
      %c0_20 = arith.constant 0 : index
      %c0_21 = arith.constant 0 : index
      %38 = arith.index_cast %33 : i32 to index
      %39 = vector.load %arg5[%c0_20, %c0_21, %38] : memref<2x8x4096xf32, #tpu.memory_space<vmem>>, vector<2x8x1024xf32>
      tpu.vector_store %arg5[%c0_20, %c0_21, %38], %37 {strides = array<i32>} : memref<2x8x4096xf32, #tpu.memory_space<vmem>>, vector<2x8x1024xf32>,
      %c0_22 = arith.constant 0 : index
      %c8 = arith.constant 8 : index
      %40 = arith.index_cast %33 : i32 to index
      %41 = vector.load %arg0[%c0_22, %c8, %40] : memref<2x16x4096xf32, #tpu.memory_space<vmem>>, vector<2x8x1024xf32>
      %42 = vector.broadcast %30 : vector<2x1x1xf32> to vector<2x8x1024xf32>
      %43 = arith.mulf %41, %42 : vector<2x8x1024xf32>
      %c0_23 = arith.constant 0 : index
      %c0_24 = arith.constant 0 : index
      %44 = arith.index_cast %33 : i32 to index
      %45 = vector.load %arg6[%c0_23, %c0_24, %44] : memref<2x8x4096xf32, #tpu.memory_space<vmem>>, vector<2x8x1024xf32>
      tpu.vector_store %arg6[%c0_23, %c0_24, %44], %43 {strides = array<i32>} : memref<2x8x4096xf32, #tpu.memory_space<vmem>>, vector<2x8x1024xf32>,
    }
    %c4_i32_17 = arith.constant 4 : i32
    return
  }
}

</mosaic_0001>

<llo_original>
// kernel: tpu_custom_call.1
$region0: #{tpu_custom_call.1}
  #allocation0 [shape = 'u32[]', space=smem, size = 0x4, offset = 0x4, fixed_abs, tag = 'smem constant byte address 0x4 - core index']
  #allocation1 [shape = 'u32[144,128]{1,0:T(1,128)}', space=vmem, size = 0x12000, scoped, tag = 'internal scratch']
  %s0 = inlined_call_operand.hbm [shape: f32[2,16,4096], index: 0, kind: input, shape index: {}]
  %s1 = inlined_call_operand.vmem [shape: f32[16,4], index: 1, kind: input, shape index: {}]
  %s2 = inlined_call_operand.vmem [shape: f32[1,4], index: 2, kind: input, shape index: {}]
  %s3 = inlined_call_operand.vmem [shape: f32[4,2], index: 3, kind: input, shape index: {}]
  %s4 = inlined_call_operand.vmem [shape: f32[1,2], index: 4, kind: input, shape index: {}]
  %s5 = inlined_call_operand.hbm [shape: f32[2,8,4096], index: 5, kind: output, shape index: {0}]
  %s6 = inlined_call_operand.hbm [shape: f32[2,8,4096], index: 6, kind: output, shape index: {1}]
  %7 = xla_tuple %s5, %s6
  %s8 = sld [smem:[#allocation0]]
  $region56: #{tpu_custom_call.1} parent=0
    _
  %s10 = ssub.s32 1, %s8
  %s11 = scalar_select 0, %s10, %s8
  $region1: #{tpu_custom_call.1} parent=0
    #allocation2 [shape = 'u8[524288]{0}', space=vmem, size = 0x80000, scoped, tag = 'input window, operand 0, single buffered']
    #allocation3 [shape = 's32[1]{0}', space=sflag, size = 0x4, scoped, tag = 'scoped memory for tpu_custom_call.1']
    #allocation4 [shape = 's32[1]{0}', space=sflag, size = 0x4, scoped, tag = 'scoped memory for tpu_custom_call.1']
    #allocation5 [shape = 'u8[262144]{0}', space=vmem, size = 0x40000, scoped, tag = 'output window, operand 0, single buffered']
    #allocation6 [shape = 'u8[262144]{0}', space=vmem, size = 0x40000, scoped, tag = 'output window, operand 1, single buffered']
    #allocation7 [shape = 's32[1]{0}', space=sflag, size = 0x4, scoped, tag = 'scoped memory for tpu_custom_call.1']
    %12 = vsyncpa [#allocation3], 0
    %13 = vsyncpa [#allocation4], 0
    %14 = vsyncpa [#allocation7], 0
    // Predicated region
    $region2: #{tpu_custom_call.1} parent=1 // pred_check
      _
    $region3: #{tpu_custom_call.1} parent=1 // pred_check_branch
      %16 = sbr.rel (0) target = $region5
    $region4: #{tpu_custom_call.1} parent=1 // pred_region
      %s18 = ssub.s32 16384, 16384
      %19 = vsyncadd [#allocation3], %s18
      %s20 = sshll.u32 [#allocation2], 4
      %s21 = int_to_ptr.vmem [resolvable:$true] %s20
      %26 = dma.hbm_to_vmem [thread:$0]  %s0, 16384, %s21, [#allocation3], 4096, 4096, 256
    $region5: #{tpu_custom_call.1} parent=1 // pred_fallthru
      _
    // Predicated region
    $region6: #{tpu_custom_call.1} parent=1 // pred_check
      _
    $region7: #{tpu_custom_call.1} parent=1 // pred_check_branch
      %28 = sbr.rel (0) target = $region9
    $region8: #{tpu_custom_call.1} parent=1 // pred_region
      _
    $region9: #{tpu_custom_call.1} parent=1 // pred_fallthru
      _
    // Predicated region
    $region10: #{tpu_custom_call.1} parent=1 // pred_check
      _
    $region11: #{tpu_custom_call.1} parent=1 // pred_check_branch
      %30 = sbr.rel (0) target = $region13
    $region12: #{tpu_custom_call.1} parent=1 // pred_region
      _
    $region13: #{tpu_custom_call.1} parent=1 // pred_fallthru
      _
    // Predicated region
    $region14: #{tpu_custom_call.1} parent=1 // pred_check
      _
    $region15: #{tpu_custom_call.1} parent=1 // pred_check_branch
      %32 = sbr.rel (0) target = $region17
    $region16: #{tpu_custom_call.1} parent=1 // pred_region
      _
    $region17: #{tpu_custom_call.1} parent=1 // pred_fallthru
      _
    // Predicated region
    $region18: #{tpu_custom_call.1} parent=1 // pred_check
      _
    $region19: #{tpu_custom_call.1} parent=1 // pred_check_branch
      %34 = sbr.rel (0) target = $region21
    $region20: #{tpu_custom_call.1} parent=1 // pred_region
      _
    $region21: #{tpu_custom_call.1} parent=1 // pred_fallthru
      _
    // Predicated region
    $region22: #{tpu_custom_call.1} parent=1 // pred_check
      _
    $region23: #{tpu_custom_call.1} parent=1 // pred_check_branch
      %36 = sbr.rel (0) target = $region25
    $region24: #{tpu_custom_call.1} parent=1 // pred_region
      %37 = dma.done [#allocation3], 16384
    $region25: #{tpu_custom_call.1} parent=1 // pred_fallthru
      _
    loop: start=0, step=1, limit=4
    $region26: #{tpu_custom_call.1} parent=1 // loop_pre_header
      _
    $region27: #{tpu_custom_call.1} parent=1 // loop_header
      %s39 = sphi 0, %s43
      %p40 = scmp.ge.s32.totalorder %s39, 4
      %v44 = vphi 0.0, %v125
      %v45 = vphi 0.0, %v126
      %v46 = vphi 0.0, %v127
      %v47 = vphi 0.0, %v128
      %v48 = vphi -inf, %v165
      %v49 = vphi -inf, %v166
      %v50 = vphi -inf, %v167
      %v51 = vphi -inf, %v168
    $region28: #{tpu_custom_call.1} parent=1 // loop_header_branch
      %42 = sbr.rel (%p40) target = $region32
    $region29: #{tpu_custom_call.1} parent=1 // loop_body
      %s52 = smul.u32 %s39, 1024
      %s53 = sshra.s32 %s52, 7
      %s54 = sand.u32 %s52, 127
      %s55 = smul.addr %s53, 8
      %s56 = scalar_lea.vmem [#allocation2], %s55
      %v57 = vld [vmem:[%s56] sm:$0xff]
      %v58 = vld [vmem:[%s56 + $0x8] sm:$0xff]
      %v59 = vld [vmem:[%s56 + $0x10] sm:$0xff]
      %v60 = vld [vmem:[%s56 + $0x18] sm:$0xff]
      %v61 = vld [vmem:[%s56 + $0x20] sm:$0xff]
      %v62 = vld [vmem:[%s56 + $0x28] sm:$0xff]
      %v63 = vld [vmem:[%s56 + $0x30] sm:$0xff]
      %v64 = vld [vmem:[%s56 + $0x38] sm:$0xff]
      %v65 = vld [vmem:[%s56 + $0x100] sm:$0xff]
      %v66 = vld [vmem:[%s56 + $0x108] sm:$0xff]
      %v67 = vld [vmem:[%s56 + $0x110] sm:$0xff]
      %v68 = vld [vmem:[%s56 + $0x118] sm:$0xff]
      %v69 = vld [vmem:[%s56 + $0x120] sm:$0xff]
      %v70 = vld [vmem:[%s56 + $0x128] sm:$0xff]
      %v71 = vld [vmem:[%s56 + $0x130] sm:$0xff]
      %v72 = vld [vmem:[%s56 + $0x138] sm:$0xff]
      %v73 = vld [vmem:[%s56 + $0x200] sm:$0xff]
      %v74 = vld [vmem:[%s56 + $0x208] sm:$0xff]
      %v75 = vld [vmem:[%s56 + $0x210] sm:$0xff]
      %v76 = vld [vmem:[%s56 + $0x218] sm:$0xff]
      %v77 = vld [vmem:[%s56 + $0x220] sm:$0xff]
      %v78 = vld [vmem:[%s56 + $0x228] sm:$0xff]
      %v79 = vld [vmem:[%s56 + $0x230] sm:$0xff]
      %v80 = vld [vmem:[%s56 + $0x238] sm:$0xff]
      %v81 = vld [vmem:[%s56 + $0x300] sm:$0xff]
      %v82 = vld [vmem:[%s56 + $0x308] sm:$0xff]
      %v83 = vld [vmem:[%s56 + $0x310] sm:$0xff]
      %v84 = vld [vmem:[%s56 + $0x318] sm:$0xff]
      %v85 = vld [vmem:[%s56 + $0x320] sm:$0xff]
      %v86 = vld [vmem:[%s56 + $0x328] sm:$0xff]
      %v87 = vld [vmem:[%s56 + $0x330] sm:$0xff]
      %v88 = vld [vmem:[%s56 + $0x338] sm:$0xff]
      %v89 = vadd.f32 %v57, %v58
      %v90 = vadd.f32 %v89, %v59
      %v91 = vadd.f32 %v90, %v60
      %v92 = vadd.f32 %v91, %v61
      %v93 = vadd.f32 %v92, %v62
      %v94 = vadd.f32 %v93, %v63
      %v95 = vadd.f32 %v94, %v64
      %96 = vadd.xlane.f32.xlu0 %v95
      %v97 = vpop.xlane.xlu0 %96
      %v98 = vadd.f32 %v65, %v66
      %v99 = vadd.f32 %v98, %v67
      %v100 = vadd.f32 %v99, %v68
      %v101 = vadd.f32 %v100, %v69
      %v102 = vadd.f32 %v101, %v70
      %v103 = vadd.f32 %v102, %v71
      %v104 = vadd.f32 %v103, %v72
      %105 = vadd.xlane.f32.xlu0 %v104
      %v106 = vpop.xlane.xlu0 %105
      %v107 = vadd.f32 %v73, %v74
      %v108 = vadd.f32 %v107, %v75
      %v109 = vadd.f32 %v108, %v76
      %v110 = vadd.f32 %v109, %v77
      %v111 = vadd.f32 %v110, %v78
      %v112 = vadd.f32 %v111, %v79
      %v113 = vadd.f32 %v112, %v80
      %114 = vadd.xlane.f32.xlu0 %v113
      %v115 = vpop.xlane.xlu0 %114
      %v116 = vadd.f32 %v81, %v82
      %v117 = vadd.f32 %v116, %v83
      %v118 = vadd.f32 %v117, %v84
      %v119 = vadd.f32 %v118, %v85
      %v120 = vadd.f32 %v119, %v86
      %v121 = vadd.f32 %v120, %v87
      %v122 = vadd.f32 %v121, %v88
      %123 = vadd.xlane.f32.xlu0 %v122
      %v124 = vpop.xlane.xlu0 %123
      %v125 = vadd.f32 %v44, %v97
      %v126 = vadd.f32 %v45, %v106
      %v127 = vadd.f32 %v46, %v115
      %v128 = vadd.f32 %v47, %v124
      %v129 = vmax.f32 %v57, %v58
      %v130 = vmax.f32 %v129, %v59
      %v131 = vmax.f32 %v130, %v60
      %v132 = vmax.f32 %v131, %v61
      %v133 = vmax.f32 %v132, %v62
      %v134 = vmax.f32 %v133, %v63
      %v135 = vmax.f32 %v134, %v64
      %136 = vmax.xlane.f32.xlu0 %v135
      %v137 = vpop.xlane.xlu0 %136
      %v138 = vmax.f32 %v65, %v66
      %v139 = vmax.f32 %v138, %v67
      %v140 = vmax.f32 %v139, %v68
      %v141 = vmax.f32 %v140, %v69
      %v142 = vmax.f32 %v141, %v70
      %v143 = vmax.f32 %v142, %v71
      %v144 = vmax.f32 %v143, %v72
      %145 = vmax.xlane.f32.xlu0 %v144
      %v146 = vpop.xlane.xlu0 %145
      %v147 = vmax.f32 %v73, %v74
      %v148 = vmax.f32 %v147, %v75
      %v149 = vmax.f32 %v148, %v76
      %v150 = vmax.f32 %v149, %v77
      %v151 = vmax.f32 %v150, %v78
      %v152 = vmax.f32 %v151, %v79
      %v153 = vmax.f32 %v152, %v80
      %154 = vmax.xlane.f32.xlu0 %v153
      %v155 = vpop.xlane.xlu0 %154
      %v156 = vmax.f32 %v81, %v82
      %v157 = vmax.f32 %v156, %v83
      %v158 = vmax.f32 %v157, %v84
      %v159 = vmax.f32 %v158, %v85
      %v160 = vmax.f32 %v159, %v86
      %v161 = vmax.f32 %v160, %v87
      %v162 = vmax.f32 %v161, %v88
      %163 = vmax.xlane.f32.xlu0 %v162
      %v164 = vpop.xlane.xlu0 %163
      %v165 = vmax.f32 %v48, %v137
      %v166 = vmax.f32 %v49, %v146
      %v167 = vmax.f32 %v50, %v155
      %v168 = vmax.f32 %v51, %v164
    $region30: #{tpu_custom_call.1} parent=1 // loop_footer
      %s43 = sadd.s32 1, %s39
    $region31: #{tpu_custom_call.1} parent=1 // loop_footer_branch
      %38 = sbr.rel target = $region27
    $region32: #{tpu_custom_call.1} parent=1 // loop_exit
      _
    %v169 = vmul.f32 %v44, 0.00024414063
    %v170 = vmul.f32 %v45, 0.00024414063
    %v171 = vmul.f32 %v46, 0.00024414063
    %v172 = vmul.f32 %v47, 0.00024414063
    %v173 = vld [vmem:[%s1] sm:$0xff]
    %v174 = vld [vmem:[%s1 + $0x8] sm:$0xff]
    %v175 = vld [vmem:[%s2] sm:$0x1]
    %v176 = vld [vmem:[%s3] sm:$0xf]
    %v177 = vld [vmem:[%s4] sm:$0x1]
    %v182 = vlaneseq
    %v183 = vand.u32 %v182, 127
    %v184 = vlaneseq
    %v185 = vshrl.u32 %v184, 7
    %v186 = vsub.s32 %v183, %v185
    %v187 = vrot.slane %v169, %v186
    %v188 = vadd.s32 %v183, 4294967288
    %v189 = vlaneseq
    %v190 = vshrl.u32 %v189, 7
    %v191 = vsub.s32 %v188, %v190
    %v192 = vrot.slane %v170, %v191
    %vm193 = vcmask 130112
    %v194 = vsel %vm193, %v192, %v187
    %v195 = vlaneseq
    %v196 = vshrl.u32 %v195, 7
    %v197 = vsub.s32 %v183, %v196
    %v198 = vrot.slane %v171, %v197
    %v199 = vlaneseq
    %v200 = vshrl.u32 %v199, 7
    %v201 = vsub.s32 %v188, %v200
    %v202 = vrot.slane %v172, %v201
    %v203 = vsel %vm193, %v202, %v198
    %vm204 = vcmask 1041409
    %v205 = vsel %vm204, %v203, %v194
    %v211 = vlaneseq
    %v212 = vshrl.u32 %v211, 7
    %v213 = vsub.s32 %v183, %v212
    %v214 = vrot.slane %v48, %v213
    %v215 = vlaneseq
    %v216 = vshrl.u32 %v215, 7
    %v217 = vsub.s32 %v188, %v216
    %v218 = vrot.slane %v49, %v217
    %v219 = vsel %vm193, %v218, %v214
    %v220 = vlaneseq
    %v221 = vshrl.u32 %v220, 7
    %v222 = vsub.s32 %v183, %v221
    %v223 = vrot.slane %v50, %v222
    %v224 = vlaneseq
    %v225 = vshrl.u32 %v224, 7
    %v226 = vsub.s32 %v188, %v225
    %v227 = vrot.slane %v51, %v226
    %v228 = vsel %vm193, %v227, %v223
    %vm229 = vcmask 1043459
    %v230 = vsel %vm229, %v228, %v219
    %vm232 = vcmask 1041408
    %v233 = vsel %vm232, %v205, %v230
    %v235 = vlaneseq
    %v236 = vshrl.u32 %v235, 7
    %v237 = vsub.s32 0, %v236
    %v238 = vrot.slane %v175, %v237
    %vm240 = vcmask 130048
    %v242 = vsel %vm240, %v233, 0
    %244 = vmatprep.subr.mxu0 0.0
    %245 = vmatpush1.msra.mxu0 %v173
    %246 = vmatprep.subr.mxu0 0.0
    %247 = vmatpush1.msra.mxu0 %v174
    %248 = vmatprep.subr.mxu0 0.0
    %249 = vmatpush1.msra.mxu0 0.0
    %250 = vmatprep.subr.mxu0 0.0
    %251 = vmatpush1.msra.mxu0 0.0
    %252 = vmatprep.subr.mxu0 0.0
    %253 = vmatpush1.msra.mxu0 0.0
    %254 = vmatprep.subr.mxu0 0.0
    %255 = vmatpush1.msra.mxu0 0.0
    %256 = vmatprep.subr.mxu0 0.0
    %257 = vmatpush1.msra.mxu0 0.0
    %258 = vmatprep.subr.mxu0 0.0
    %259 = vmatpush1.msra.mxu0 0.0
    %260 = vmatprep.subr.mxu0 0.0
    %261 = vmatpush1.msra.mxu0 0.0
    %262 = vmatprep.subr.mxu0 0.0
    %263 = vmatpush1.msra.mxu0 0.0
    %264 = vmatprep.subr.mxu0 0.0
    %265 = vmatpush1.msra.mxu0 0.0
    %266 = vmatprep.subr.mxu0 0.0
    %267 = vmatpush1.msra.mxu0 0.0
    %268 = vmatprep.subr.mxu0 0.0
    %269 = vmatpush1.msra.mxu0 0.0
    %270 = vmatprep.subr.mxu0 0.0
    %271 = vmatpush1.msra.mxu0 0.0
    %272 = vmatprep.subr.mxu0 0.0
    %273 = vmatpush1.msra.mxu0 0.0
    %274 = vmatprep.subr.mxu0 0.0
    %275 = vmatpush1.msra.mxu0 0.0
    %276 = vmatprep.subr.mxu0 0.0
    %277 = vmatpush1.msra.mxu0 0.0
    %278 = vmatprep.subr.mxu0 0.0
    %279 = vmatpush1.msra.mxu0 0.0
    %280 = vmatprep.subr.mxu0 0.0
    %281 = vmatpush1.msra.mxu0 0.0
    %282 = vmatprep.subr.mxu0 0.0
    %283 = vmatpush1.msra.mxu0 0.0
    %284 = vmatprep.subr.mxu0 0.0
    %285 = vmatpush1.msra.mxu0 0.0
    %286 = vmatprep.subr.mxu0 0.0
    %287 = vmatpush1.msra.mxu0 0.0
    %288 = vmatprep.subr.mxu0 0.0
    %289 = vmatpush1.msra.mxu0 0.0
    %290 = vmatprep.subr.mxu0 0.0
    %291 = vmatpush1.msra.mxu0 0.0
    %292 = vmatprep.subr.mxu0 0.0
    %293 = vmatpush1.msra.mxu0 0.0
    %294 = vmatprep.subr.mxu0 0.0
    %295 = vmatpush1.msra.mxu0 0.0
    %296 = vmatprep.subr.mxu0 0.0
    %297 = vmatpush1.msra.mxu0 0.0
    %298 = vmatprep.subr.mxu0 0.0
    %299 = vmatpush1.msra.mxu0 0.0
    %300 = vmatprep.subr.mxu0 0.0
    %301 = vmatpush1.msra.mxu0 0.0
    %302 = vmatprep.subr.mxu0 0.0
    %303 = vmatpush1.msra.mxu0 0.0
    %304 = vmatprep.subr.mxu0 0.0
    %305 = vmatpush1.msra.mxu0 0.0
    %306 = vmatprep.subr.mxu0 0.0
    %307 = vmatpush1.msra.mxu0 0.0
    %308 = vmatprep.mubr.f32.mxu0 0.0
    %309 = vmatmul.mubr.f32.gmra.mrb[0].mxu0 %v242
    %v310 = vpop.f32.mrb[0].mxu0
    %v311 = vadd.f32 %v238, %v310
    %v312 = vpop.f32.mrb[0].mxu0
    %313 = vdwg.mxu0
    %v314 = vmax.f32 %v311, 0.0
    %v316 = vlaneseq
    %v317 = vshrl.u32 %v316, 7
    %v318 = vsub.s32 0, %v317
    %v319 = vrot.slane %v177, %v318
    %vm321 = vcmask 31744
    %v323 = vsel %vm321, %v314, 0
    %vm325 = vcmask 1043456
    %v327 = vsel %vm325, %v176, 0
    %329 = vmatprep.subr.mxu0 0.0
    %330 = vmatpush1.msra.mxu0 %v327
    %331 = vmatprep.subr.mxu0 0.0
    %332 = vmatpush1.msra.mxu0 0.0
    %333 = vmatprep.subr.mxu0 0.0
    %334 = vmatpush1.msra.mxu0 0.0
    %335 = vmatprep.subr.mxu0 0.0
    %336 = vmatpush1.msra.mxu0 0.0
    %337 = vmatprep.subr.mxu0 0.0
    %338 = vmatpush1.msra.mxu0 0.0
    %339 = vmatprep.subr.mxu0 0.0
    %340 = vmatpush1.msra.mxu0 0.0
    %341 = vmatprep.subr.mxu0 0.0
    %342 = vmatpush1.msra.mxu0 0.0
    %343 = vmatprep.subr.mxu0 0.0
    %344 = vmatpush1.msra.mxu0 0.0
    %345 = vmatprep.subr.mxu0 0.0
    %346 = vmatpush1.msra.mxu0 0.0
    %347 = vmatprep.subr.mxu0 0.0
    %348 = vmatpush1.msra.mxu0 0.0
    %349 = vmatprep.subr.mxu0 0.0
    %350 = vmatpush1.msra.mxu0 0.0
    %351 = vmatprep.subr.mxu0 0.0
    %352 = vmatpush1.msra.mxu0 0.0
    %353 = vmatprep.subr.mxu0 0.0
    %354 = vmatpush1.msra.mxu0 0.0
    %355 = vmatprep.subr.mxu0 0.0
    %356 = vmatpush1.msra.mxu0 0.0
    %357 = vmatprep.subr.mxu0 0.0
    %358 = vmatpush1.msra.mxu0 0.0
    %359 = vmatprep.subr.mxu0 0.0
    %360 = vmatpush1.msra.mxu0 0.0
    %361 = vmatprep.subr.mxu0 0.0
    %362 = vmatpush1.msra.mxu0 0.0
    %363 = vmatprep.subr.mxu0 0.0
    %364 = vmatpush1.msra.mxu0 0.0
    %365 = vmatprep.subr.mxu0 0.0
    %366 = vmatpush1.msra.mxu0 0.0
    %367 = vmatprep.subr.mxu0 0.0
    %368 = vmatpush1.msra.mxu0 0.0
    %369 = vmatprep.subr.mxu0 0.0
    %370 = vmatpush1.msra.mxu0 0.0
    %371 = vmatprep.subr.mxu0 0.0
    %372 = vmatpush1.msra.mxu0 0.0
    %373 = vmatprep.subr.mxu0 0.0
    %374 = vmatpush1.msra.mxu0 0.0
    %375 = vmatprep.subr.mxu0 0.0
    %376 = vmatpush1.msra.mxu0 0.0
    %377 = vmatprep.subr.mxu0 0.0
    %378 = vmatpush1.msra.mxu0 0.0
    %379 = vmatprep.subr.mxu0 0.0
    %380 = vmatpush1.msra.mxu0 0.0
    %381 = vmatprep.subr.mxu0 0.0
    %382 = vmatpush1.msra.mxu0 0.0
    %383 = vmatprep.subr.mxu0 0.0
    %384 = vmatpush1.msra.mxu0 0.0
    %385 = vmatprep.subr.mxu0 0.0
    %386 = vmatpush1.msra.mxu0 0.0
    %387 = vmatprep.subr.mxu0 0.0
    %388 = vmatpush1.msra.mxu0 0.0
    %389 = vmatprep.subr.mxu0 0.0
    %390 = vmatpush1.msra.mxu0 0.0
    %391 = vmatprep.subr.mxu0 0.0
    %392 = vmatpush1.msra.mxu0 0.0
    %393 = vmatprep.mubr.f32.mxu0 0.0
    %394 = vmatmul.mubr.f32.gmra.mrb[0].mxu0 %v323
    %v395 = vpop.f32.mrb[0].mxu0
    %v396 = vadd.f32 %v319, %v395
    %v397 = vpop.f32.mrb[0].mxu0
    %398 = vdwg.mxu0
    %v400 = vrot.slane %v396, 2
    %v402 = vadd.f32 %v396, %v400
    %v403 = vxor.u32 %v402, 2147483648
    %v404 = vmul.f32 %v403, 1.442695
    %v405 = vpow.pop %v404
    %v406 = vadd.f32 %v405, 1.0
    %v407 = vrcp.pop %v406
    %v408 = vmul.f32 1.0, %v407
    %v411 = vunpack.c.l.s4 1966171168
    %v412 = vunpack.c.0.s8 %v411
    %v413 = vlaneseq
    %v414 = vshrl.u32 %v413, 7
    %v415 = vsub.s32 %v412, %v414
    %v416 = vrot.slane %v408, %v415
    %v417 = vcombine.high %v416, %v416
    %v419 = vunpack.c.l.s4 1966171168
    %v420 = vunpack.c.0.s8 %v419
    %v421 = vlaneseq
    %v422 = vshrl.u32 %v421, 7
    %v423 = vsub.s32 %v420, %v422
    %v424 = vrot.slane %v416, %v423
    %v426 = vunpack.c.l.s4 1966171168
    %v427 = vunpack.c.0.s8 %v426
    %v428 = vlaneseq
    %v429 = vshrl.u32 %v428, 7
    %v430 = vsub.s32 %v427, %v429
    %v431 = vrot.slane %v417, %v430
    loop: start=0, step=1, limit=4
    $region33: #{tpu_custom_call.1} parent=1 // loop_pre_header
      _
    $region34: #{tpu_custom_call.1} parent=1 // loop_header
      %s433 = sphi 0, %s437
      %p434 = scmp.ge.s32.totalorder %s433, 4
    $region35: #{tpu_custom_call.1} parent=1 // loop_header_branch
      %436 = sbr.rel (%p434) target = $region39
    $region36: #{tpu_custom_call.1} parent=1 // loop_body
      %s438 = smul.u32 %s433, 1024
      %s439 = sshra.s32 %s438, 7
      %s440 = sand.u32 %s438, 127
      %s441 = smul.addr %s439, 8
      %s442 = scalar_lea.vmem [#allocation2], %s441
      %v443 = vld [vmem:[%s442] sm:$0xff]
      %v444 = vld [vmem:[%s442 + $0x8] sm:$0xff]
      %v445 = vld [vmem:[%s442 + $0x10] sm:$0xff]
      %v446 = vld [vmem:[%s442 + $0x18] sm:$0xff]
      %v447 = vld [vmem:[%s442 + $0x20] sm:$0xff]
      %v448 = vld [vmem:[%s442 + $0x28] sm:$0xff]
      %v449 = vld [vmem:[%s442 + $0x30] sm:$0xff]
      %v450 = vld [vmem:[%s442 + $0x38] sm:$0xff]
      %v451 = vld [vmem:[%s442 + $0x200] sm:$0xff]
      %v452 = vld [vmem:[%s442 + $0x208] sm:$0xff]
      %v453 = vld [vmem:[%s442 + $0x210] sm:$0xff]
      %v454 = vld [vmem:[%s442 + $0x218] sm:$0xff]
      %v455 = vld [vmem:[%s442 + $0x220] sm:$0xff]
      %v456 = vld [vmem:[%s442 + $0x228] sm:$0xff]
      %v457 = vld [vmem:[%s442 + $0x230] sm:$0xff]
      %v458 = vld [vmem:[%s442 + $0x238] sm:$0xff]
      %v459 = vlaneseq
      %v460 = vshrl.u32 %v459, 7
      %v461 = vsub.s32 0, %v460
      %v462 = vrot.slane %v424, %v461
      %v463 = vlaneseq
      %v464 = vshrl.u32 %v463, 7
      %v465 = vsub.s32 0, %v464
      %v466 = vrot.slane %v431, %v465
      %467 = vset.pattern.permute.xlu0 0
      %468 = vperm.xlu0 %467, %v462
      %v469 = vpop.permute.xlu0 %468
      %471 = vset.pattern.permute.xlu0 0
      %472 = vperm.xlu0 %471, %v466
      %v473 = vpop.permute.xlu0 %472
      %v475 = vmul.f32 %v443, %v469
      %v476 = vmul.f32 %v444, %v469
      %v477 = vmul.f32 %v445, %v469
      %v478 = vmul.f32 %v446, %v469
      %v479 = vmul.f32 %v447, %v469
      %v480 = vmul.f32 %v448, %v469
      %v481 = vmul.f32 %v449, %v469
      %v482 = vmul.f32 %v450, %v469
      %v483 = vmul.f32 %v451, %v473
      %v484 = vmul.f32 %v452, %v473
      %v485 = vmul.f32 %v453, %v473
      %v486 = vmul.f32 %v454, %v473
      %v487 = vmul.f32 %v455, %v473
      %v488 = vmul.f32 %v456, %v473
      %v489 = vmul.f32 %v457, %v473
      %v490 = vmul.f32 %v458, %v473
      %s491 = smul.addr %s439, 8
      %s492 = scalar_lea.vmem [#allocation5], %s491
      %493 = vst [vmem:[%s492] sm:$0xff] %v475
      %494 = vst [vmem:[%s492 + $0x8] sm:$0xff] %v476
      %495 = vst [vmem:[%s492 + $0x10] sm:$0xff] %v477
      %496 = vst [vmem:[%s492 + $0x18] sm:$0xff] %v478
      %497 = vst [vmem:[%s492 + $0x20] sm:$0xff] %v479
      %498 = vst [vmem:[%s492 + $0x28] sm:$0xff] %v480
      %499 = vst [vmem:[%s492 + $0x30] sm:$0xff] %v481
      %500 = vst [vmem:[%s492 + $0x38] sm:$0xff] %v482
      %501 = vst [vmem:[%s492 + $0x100] sm:$0xff] %v483
      %502 = vst [vmem:[%s492 + $0x108] sm:$0xff] %v484
      %503 = vst [vmem:[%s492 + $0x110] sm:$0xff] %v485
      %504 = vst [vmem:[%s492 + $0x118] sm:$0xff] %v486
      %505 = vst [vmem:[%s492 + $0x120] sm:$0xff] %v487
      %506 = vst [vmem:[%s492 + $0x128] sm:$0xff] %v488
      %507 = vst [vmem:[%s492 + $0x130] sm:$0xff] %v489
      %508 = vst [vmem:[%s492 + $0x138] sm:$0xff] %v490
      %v509 = vld [vmem:[%s442 + $0x100] sm:$0xff]
      %v510 = vld [vmem:[%s442 + $0x108] sm:$0xff]
      %v511 = vld [vmem:[%s442 + $0x110] sm:$0xff]
      %v512 = vld [vmem:[%s442 + $0x118] sm:$0xff]
      %v513 = vld [vmem:[%s442 + $0x120] sm:$0xff]
      %v514 = vld [vmem:[%s442 + $0x128] sm:$0xff]
      %v515 = vld [vmem:[%s442 + $0x130] sm:$0xff]
      %v516 = vld [vmem:[%s442 + $0x138] sm:$0xff]
      %v517 = vld [vmem:[%s442 + $0x300] sm:$0xff]
      %v518 = vld [vmem:[%s442 + $0x308] sm:$0xff]
      %v519 = vld [vmem:[%s442 + $0x310] sm:$0xff]
      %v520 = vld [vmem:[%s442 + $0x318] sm:$0xff]
      %v521 = vld [vmem:[%s442 + $0x320] sm:$0xff]
      %v522 = vld [vmem:[%s442 + $0x328] sm:$0xff]
      %v523 = vld [vmem:[%s442 + $0x330] sm:$0xff]
      %v524 = vld [vmem:[%s442 + $0x338] sm:$0xff]
      %525 = vset.pattern.permute.xlu0 1
      %526 = vperm.xlu0 %525, %v462
      %v527 = vpop.permute.xlu0 %526
      %529 = vset.pattern.permute.xlu0 1
      %530 = vperm.xlu0 %529, %v466
      %v531 = vpop.permute.xlu0 %530
      %v533 = vmul.f32 %v509, %v527
      %v534 = vmul.f32 %v510, %v527
      %v535 = vmul.f32 %v511, %v527
      %v536 = vmul.f32 %v512, %v527
      %v537 = vmul.f32 %v513, %v527
      %v538 = vmul.f32 %v514, %v527
      %v539 = vmul.f32 %v515, %v527
      %v540 = vmul.f32 %v516, %v527
      %v541 = vmul.f32 %v517, %v531
      %v542 = vmul.f32 %v518, %v531
      %v543 = vmul.f32 %v519, %v531
      %v544 = vmul.f32 %v520, %v531
      %v545 = vmul.f32 %v521, %v531
      %v546 = vmul.f32 %v522, %v531
      %v547 = vmul.f32 %v523, %v531
      %v548 = vmul.f32 %v524, %v531
      %s549 = smul.addr %s439, 8
      %s550 = scalar_lea.vmem [#allocation6], %s549
      %551 = vst [vmem:[%s550] sm:$0xff] %v533
      %552 = vst [vmem:[%s550 + $0x8] sm:$0xff] %v534
      %553 = vst [vmem:[%s550 + $0x10] sm:$0xff] %v535
      %554 = vst [vmem:[%s550 + $0x18] sm:$0xff] %v536
      %555 = vst [vmem:[%s550 + $0x20] sm:$0xff] %v537
      %556 = vst [vmem:[%s550 + $0x28] sm:$0xff] %v538
      %557 = vst [vmem:[%s550 + $0x30] sm:$0xff] %v539
      %558 = vst [vmem:[%s550 + $0x38] sm:$0xff] %v540
      %559 = vst [vmem:[%s550 + $0x100] sm:$0xff] %v541
      %560 = vst [vmem:[%s550 + $0x108] sm:$0xff] %v542
      %561 = vst [vmem:[%s550 + $0x110] sm:$0xff] %v543
      %562 = vst [vmem:[%s550 + $0x118] sm:$0xff] %v544
      %563 = vst [vmem:[%s550 + $0x120] sm:$0xff] %v545
      %564 = vst [vmem:[%s550 + $0x128] sm:$0xff] %v546
      %565 = vst [vmem:[%s550 + $0x130] sm:$0xff] %v547
      %566 = vst [vmem:[%s550 + $0x138] sm:$0xff] %v548
    $region37: #{tpu_custom_call.1} parent=1 // loop_footer
      %s437 = sadd.s32 1, %s433
    $region38: #{tpu_custom_call.1} parent=1 // loop_footer_branch
      %432 = sbr.rel target = $region34
    $region39: #{tpu_custom_call.1} parent=1 // loop_exit
      _
    // Predicated region
    $region40: #{tpu_custom_call.1} parent=1 // pred_check
      _
    $region41: #{tpu_custom_call.1} parent=1 // pred_check_branch
      %568 = sbr.rel (0) target = $region43
    $region42: #{tpu_custom_call.1} parent=1 // pred_region
      %s570 = ssub.s32 8192, 8192
      %571 = vsyncadd [#allocation4], %s570
      %s572 = sshll.u32 [#allocation5], 4
      %s573 = int_to_ptr.vmem [resolvable:$true] %s572
      %578 = dma.vmem_to_hbm [thread:$0]  %s573, 8192, %s5, [#allocation4], 4096, 4096, 256
    $region43: #{tpu_custom_call.1} parent=1 // pred_fallthru
      _
    // Predicated region
    $region44: #{tpu_custom_call.1} parent=1 // pred_check
      _
    $region45: #{tpu_custom_call.1} parent=1 // pred_check_branch
      %580 = sbr.rel (0) target = $region47
    $region46: #{tpu_custom_call.1} parent=1 // pred_region
      %s582 = ssub.s32 8192, 8192
      %583 = vsyncadd [#allocation7], %s582
      %s584 = sshll.u32 [#allocation6], 4
      %s585 = int_to_ptr.vmem [resolvable:$true] %s584
      %590 = dma.vmem_to_hbm [thread:$0]  %s585, 8192, %s6, [#allocation7], 4096, 4096, 256
    $region47: #{tpu_custom_call.1} parent=1 // pred_fallthru
      _
    // Predicated region
    $region48: #{tpu_custom_call.1} parent=1 // pred_check
      _
    $region49: #{tpu_custom_call.1} parent=1 // pred_check_branch
      %592 = sbr.rel (0) target = $region51
    $region50: #{tpu_custom_call.1} parent=1 // pred_region
      %593 = dma.done [#allocation4], 8192
    $region51: #{tpu_custom_call.1} parent=1 // pred_fallthru
      _
    // Predicated region
    $region52: #{tpu_custom_call.1} parent=1 // pred_check
      _
    $region53: #{tpu_custom_call.1} parent=1 // pred_check_branch
      %595 = sbr.rel (0) target = $region55
    $region54: #{tpu_custom_call.1} parent=1 // pred_region
      %596 = dma.done [#allocation7], 8192
    $region55: #{tpu_custom_call.1} parent=1 // pred_fallthru
      _
    %597 = vsyncpa [#allocation3], 1
    %598 = vsyncpa [#allocation4], 1
    %599 = vsyncpa [#allocation7], 1

</llo_original>
